<compile_context>
chip_gen: v5e
topology: v5e:2x2
jax: 0.10.0
libtpu: 0.0.40
codegen_flags: <defaults>
</compile_context>

<pallas_src>
import functools

import jax
import jax.numpy as jnp
from jax.experimental import pallas as pl
from jax.experimental.pallas import tpu as pltpu


def _angular_conv_kernel(x_ref, w1_ref, w2_ref, o_ref):
    # x_ref : (c_in, tm)   activation tile, lane dim = flattened h*w
    # w1_ref: (k, c_in)    conv1 weight (PyTorch layout, 1x1x1 dims squeezed), bf16
    # w2_ref: (c_out, k)   conv2 weight, bf16
    # o_ref : (c_out, tm)  lane-dense output tile
    x = x_ref[...].astype(w1_ref.dtype)                    # bf16 for single-pass MXU
    h = jnp.dot(w1_ref[...], x, preferred_element_type=jnp.float32)   # (k, tm) f32
    h = jnp.where(h >= 0, h, 0.2 * h)                      # LeakyReLU(0.2) in f32
    o = jnp.dot(w2_ref[...], h.astype(w2_ref.dtype),
                preferred_element_type=jnp.float32)        # (c_out, tm) f32
    o = jnp.where(o >= 0, o, 0.2 * o)                      # LeakyReLU(0.2) in f32
    o_ref[...] = o.astype(o_ref.dtype)


@functools.partial(jax.jit, static_argnames=("tm", "compute_dtype"))
def angular_conv_pallas(fm, w1, w2, *, tm=4096, compute_dtype=jnp.bfloat16):
    """fm: (b, c, n, h, w) NCDHW; w1: (K, c*n); w2: (K*n, K)
    (PyTorch Conv3d weights with the trailing 1x1x1 kernel dims squeezed)."""
    b, c, n, h, w = fm.shape
    c_in = c * n
    k = w1.shape[0]            # AngChannel
    c_out = w2.shape[0]        # AngChannel * angRes * angRes
    hw = h * w

    # Channels-first: pure reshape of the contiguous NCDHW tensor (no transpose,
    # no padding copy).  Spatial axis becomes the lane dimension.
    x = fm.reshape(b, c_in, hw)

    # Tile the spatial axis: full extent if it fits, else a multiple of 128
    # (Pallas masks the ragged boundary block).
    if hw <= tm:
        tm_eff = hw
    else:
        tm_eff = max(128, (tm // 128) * 128)
    grid_m = pl.cdiv(hw, tm_eff)

    # Weights to bf16 at the HBM boundary (tiny arrays).
    w1c = w1.astype(compute_dtype)
    w2c = w2.astype(compute_dtype)

    itemsize = lambda dt: jnp.dtype(dt).itemsize
    cost = pl.CostEstimate(
        flops=2 * b * hw * (c_in * k + k * c_out),
        transcendentals=0,
        bytes_accessed=(b * hw * c_in * itemsize(x.dtype)
                        + b * hw * c_out * itemsize(fm.dtype)
                        + (k * c_in + c_out * k) * itemsize(compute_dtype)),
    )

    out = pl.pallas_call(
        _angular_conv_kernel,
        out_shape=jax.ShapeDtypeStruct((b, c_out, hw), fm.dtype),
        grid_spec=pltpu.PrefetchScalarGridSpec(
            num_scalar_prefetch=0,
            grid=(b, grid_m),
            in_specs=[
                pl.BlockSpec((None, c_in, tm_eff), lambda bi, mi: (bi, 0, mi)),
                pl.BlockSpec((k, c_in), lambda bi, mi: (0, 0)),
                pl.BlockSpec((c_out, k), lambda bi, mi: (0, 0)),
            ],
            out_specs=pl.BlockSpec((None, c_out, tm_eff),
                                   lambda bi, mi: (bi, 0, mi)),
        ),
        compiler_params=pltpu.CompilerParams(
            dimension_semantics=("parallel", "parallel")),
        cost_estimate=cost,
    )(x, w1c, w2c)

    # (b, c_out, hw) -> (b, K, n, h, w): pure reshape, matches the PyTorch
    # `.view(b, -1, n, h, w)` channel ordering exactly (c_out = K * n).
    return out.reshape(b, k, n, h, w)


def angular_conv_ref(fm, w1, w2):
    """Pure-JAX f32 reference mirroring the PyTorch forward."""
    b, c, n, h, w = fm.shape
    k = w1.shape[0]
    a_in = fm.reshape(b, c * n, h, w)                       # depth-1 squeezed
    h1 = jnp.einsum("oc,bchw->bohw", w1, a_in,
                    precision=jax.lax.Precision.HIGHEST)
    h1 = jnp.where(h1 >= 0, h1, 0.2 * h1)
    h2 = jnp.einsum("oc,bchw->bohw", w2, h1,
                    precision=jax.lax.Precision.HIGHEST)
    h2 = jnp.where(h2 >= 0, h2, 0.2 * h2)
    return h2.reshape(b, k, n, h, w)


if __name__ == "__main__":
    # Small shapes consistent with the module:
    #   ch=4, angRes=2 (n = angRes^2 = 4), AngChannel=16, batch=2, spatial=16
    ch, angRes, AngChannel = 4, 2, 16
    b, h, w = 2, 16, 16
    n = angRes * angRes
    c_in = ch * n                       # 16
    c_out = AngChannel * n              # 64

    key = jax.random.PRNGKey(0)
    k_fm, k_w1, k_w2 = jax.random.split(key, 3)
    fm = jax.random.normal(k_fm, (b, ch, n, h, w), dtype=jnp.float32)
    # Conv3d weights with the 1x1x1 kernel dims squeezed out.
    w1 = jax.random.normal(k_w1, (AngChannel, c_in), dtype=jnp.float32) * 0.1
    w2 = jax.random.normal(k_w2, (c_out, AngChannel), dtype=jnp.float32) * 0.1

    out = angular_conv_pallas(fm, w1, w2)
    out = jax.block_until_ready(out)

    ref = angular_conv_ref(fm, w1, w2)
    assert out.shape == (b, AngChannel, n, h, w), out.shape
    # bf16 MXU inputs -> compare against the f32 reference with a bf16-level
    # tolerance (contraction dim is only 16, so error stays ~1e-2 max).
    assert jnp.allclose(out, ref, atol=2e-2, rtol=2e-2), "mismatch vs reference"
    print("KERNEL_OK")
</pallas_src>

<mosaic_0001>
module attributes {stable_mosaic.version = 11 : i64} {
  func.func @_angular_conv_kernel(%arg0: i32, %arg1: i32, %arg2: memref<1x16x256xf32, #tpu.memory_space<vmem>>, %arg3: memref<16x16xbf16, #tpu.memory_space<vmem>>, %arg4: memref<64x16xbf16, #tpu.memory_space<vmem>>, %arg5: memref<1x64x256xf32, #tpu.memory_space<vmem>>) attributes {dimension_semantics = [#tpu.dimension_semantics<parallel>, #tpu.dimension_semantics<parallel>], iteration_bounds = array<i64: 2, 1>, scalar_prefetch = 0 : i64, scratch_operands = 0 : i64, tpu.core_type = #tpu.core_type<tc>, window_params = [{transform_indices = @transform_0, window_bounds = array<i64: 1, 16, 256>}, {pipeline_mode = #tpu.pipeline_mode<synchronous>, transform_indices = @transform_1, window_bounds = array<i64: 16, 16>}, {pipeline_mode = #tpu.pipeline_mode<synchronous>, transform_indices = @transform_2, window_bounds = array<i64: 64, 16>}, {transform_indices = @transform_3, window_bounds = array<i64: 1, 64, 256>}]} {
    %c0 = arith.constant 0 : index
    %c0_0 = arith.constant 0 : index
    %c0_1 = arith.constant 0 : index
    %0 = vector.load %arg2[%c0, %c0_0, %c0_1] : memref<1x16x256xf32, #tpu.memory_space<vmem>>, vector<1x16x256xf32>
    %1 = vector.shape_cast %0 : vector<1x16x256xf32> to vector<16x256xf32>
    %2 = arith.truncf %1 : vector<16x256xf32> to vector<16x256xbf16>
    %c0_2 = arith.constant 0 : index
    %c0_3 = arith.constant 0 : index
    %3 = vector.load %arg3[%c0_2, %c0_3] : memref<16x16xbf16, #tpu.memory_space<vmem>>, vector<16x16xbf16>
    %cst = arith.constant dense<0.000000e+00> : vector<16x256xf32>
    %4 = tpu.matmul %3, %2, %cst {dimension_numbers = #tpu.dot_dimension_numbers<[1], [0], [0], [1], [0, 0, 1, 1], [], []>} : vector<16x16xbf16>, vector<16x256xbf16>, vector<16x256xf32> -> vector<16x256xf32>
    %cst_4 = arith.constant 0.000000e+00 : f32
    %5 = vector.broadcast %cst_4 : f32 to vector<16x256xf32>
    %6 = arith.cmpf oge, %4, %5 : vector<16x256xf32>
    %cst_5 = arith.constant 2.000000e-01 : f32
    %7 = vector.broadcast %cst_5 : f32 to vector<16x256xf32>
    %8 = arith.mulf %7, %4 : vector<16x256xf32>
    %9 = arith.select %6, %4, %8 : vector<16x256xi1>, vector<16x256xf32>
    %c0_6 = arith.constant 0 : index
    %c0_7 = arith.constant 0 : index
    %10 = vector.load %arg4[%c0_6, %c0_7] : memref<64x16xbf16, #tpu.memory_space<vmem>>, vector<64x16xbf16>
    %11 = arith.truncf %9 : vector<16x256xf32> to vector<16x256xbf16>
    %cst_8 = arith.constant dense<0.000000e+00> : vector<64x256xf32>
    %12 = tpu.matmul %10, %11, %cst_8 {dimension_numbers = #tpu.dot_dimension_numbers<[1], [0], [0], [1], [0, 0, 1, 1], [], []>} : vector<64x16xbf16>, vector<16x256xbf16>, vector<64x256xf32> -> vector<64x256xf32>
    %cst_9 = arith.constant 0.000000e+00 : f32
    %13 = vector.broadcast %cst_9 : f32 to vector<64x256xf32>
    %14 = arith.cmpf oge, %12, %13 : vector<64x256xf32>
    %cst_10 = arith.constant 2.000000e-01 : f32
    %15 = vector.broadcast %cst_10 : f32 to vector<64x256xf32>
    %16 = arith.mulf %15, %12 : vector<64x256xf32>
    %17 = arith.select %14, %12, %16 : vector<64x256xi1>, vector<64x256xf32>
    %c0_11 = arith.constant 0 : index
    %c0_12 = arith.constant 0 : index
    %c0_13 = arith.constant 0 : index
    %18 = vector.load %arg5[%c0_11, %c0_12, %c0_13] : memref<1x64x256xf32, #tpu.memory_space<vmem>>, vector<1x64x256xf32>
    %19 = vector.shape_cast %18 : vector<1x64x256xf32> to vector<64x256xf32>
    %20 = vector.shape_cast %17 : vector<64x256xf32> to vector<1x64x256xf32>
    tpu.vector_store %arg5[%c0_11, %c0_12, %c0_13], %20 {strides = array<i32>} : memref<1x64x256xf32, #tpu.memory_space<vmem>>, vector<1x64x256xf32>,
    return
  }
  func.func @transform_0(%arg0: i32, %arg1: i32) -> (i32, i32, i32) {
    %c0_i32 = arith.constant 0 : i32
    %c0_i32_0 = arith.constant 0 : i32
    return %arg0, %c0_i32, %arg1 : i32, i32, i32
  }
  func.func @transform_1(%arg0: i32, %arg1: i32) -> (i32, i32) {
    %c0_i32 = arith.constant 0 : i32
    %c0_i32_0 = arith.constant 0 : i32
    %c0_i32_1 = arith.constant 0 : i32
    return %c0_i32, %c0_i32_0 : i32, i32
  }
  func.func @transform_2(%arg0: i32, %arg1: i32) -> (i32, i32) {
    %c0_i32 = arith.constant 0 : i32
    %c0_i32_0 = arith.constant 0 : i32
    %c0_i32_1 = arith.constant 0 : i32
    return %c0_i32, %c0_i32_0 : i32, i32
  }
  func.func @transform_3(%arg0: i32, %arg1: i32) -> (i32, i32, i32) {
    %c0_i32 = arith.constant 0 : i32
    %c0_i32_0 = arith.constant 0 : i32
    return %arg0, %c0_i32, %arg1 : i32, i32, i32
  }
}

</mosaic_0001>

<llo_original>
// kernel: angular_conv_pallas.1
$region0: #{angular_conv_pallas.1}
  #allocation0 [shape = 'u32[]', space=smem, size = 0x4, offset = 0x4, fixed_abs, tag = 'smem constant byte address 0x4 - core index']
  #allocation1 [shape = 'u32[72,128]{1,0:T(1,128)}', space=vmem, size = 0x9000, scoped, tag = 'internal scratch']
  %s0 = inlined_call_operand.vmem [shape: f32[2,16,256], index: 0, kind: input, shape index: {}]
  %s1 = inlined_call_operand.vmem [shape: bf16[16,16], index: 1, kind: input, shape index: {}]
  %s2 = inlined_call_operand.vmem [shape: bf16[64,16], index: 2, kind: input, shape index: {}]
  %s3 = inlined_call_operand.vmem [shape: f32[2,64,256], index: 3, kind: output, shape index: {}]
  %s4 = sld [smem:[#allocation0]]
  $region45: #{angular_conv_pallas.1} parent=0
    _
  %s6 = ssub.s32 1, %s4
  %s7 = scalar_select 0, %s6, %s4
  loop: start=0, step=1, limit=4
  $region2: #{angular_conv_pallas.1} parent=0 // loop_pre_header
    _
  $region3: #{angular_conv_pallas.1} parent=0 // loop_header
    %s9 = sphi 0, %s13
    %p10 = scmp.ge.s32.totalorder %s9, 4
    %s16 = sphi 0, %s28
    %s17 = sphi 0, %s24
    %s18 = sphi 0, %s16
    %s19 = sphi 0, %s17
    %s20 = sphi 0, %s18
    %s21 = sphi 0, %s19
    %s33 = sphi 0, %s35
    %s36 = sphi 0, %s33
    %s37 = sphi 0, %s36
    %s53 = sphi 0, %s37
    %s57 = sphi 0, %s57
    %s59 = sphi 0, %s57
    %s60 = sphi 0, %s59
    %s74 = sphi 0, %s60
    %s78 = sphi 0, %s78
    %s80 = sphi 0, %s78
    %s81 = sphi 0, %s80
    %s95 = sphi 0, %s81
    %s103 = sphi 0, %s105
    %s106 = sphi 0, %s103
    %s107 = sphi 0, %s106
    %s123 = sphi 0, %s107
  $region4: #{angular_conv_pallas.1} parent=0 // loop_header_branch
    %12 = sbr.rel (%p10) target = $region8
  $region5: #{angular_conv_pallas.1} parent=0 // loop_body
    %s14 = ssub.s32 %s9, 1
    %s15 = ssub.s32 %s9, 2
    %s22 = sadd.s32 1, %s17
    %p23 = scmp.ge.s32.totalorder %s22, 1
    %s24 = scalar_select %p23, 0, %s22
    %s25 = sadd.s32 1, %s16
    %s26 = scalar_select %p23, %s25, %s16
    %p27 = scmp.ge.s32.totalorder %s26, 2
    %s28 = scalar_select %p27, 0, %s26
    %s29 = ssub.s32 %s16, %s28
    %s30 = ssub.s32 %s17, %s24
    %s31 = sor.u32 %s29, %s30
    %p32 = scmp.eq.s32.totalorder %s31, 0
    %s34 = sadd.s32 %s33, 1
    %s35 = scalar_select %p32, %s33, %s34
    %p38 = pneg %p32
    %p39 = scmp.eq.s32.totalorder %s9, 1
    %p40 = por %p38, %p39
    %p41 = scmp.ne.s32.totalorder %s33, %s36
    %p42 = scmp.eq.s32.totalorder %s9, 0
    %p43 = por %p41, %p42
    %p44 = scmp.ne.s32.totalorder %s33, %s36
    %p45 = scmp.eq.s32.totalorder %s14, 1
    %p46 = por %p44, %p45
    %p47 = scmp.ne.s32.totalorder %s36, %s37
    %p48 = scmp.eq.s32.totalorder %s14, 0
    %p49 = por %p47, %p48
    %p50 = scmp.ne.s32.totalorder %s36, %s37
    %p51 = scmp.eq.s32.totalorder %s15, 1
    %p52 = por %p50, %p51
    %p54 = scmp.ne.s32.totalorder %s37, %s53
    %p55 = scmp.eq.s32.totalorder %s15, 0
    %p56 = por %p54, %p55
    %s58 = sadd.s32 %s57, 1
    %p61 = scmp.eq.s32.totalorder %s9, 1
    %p62 = scmp.ne.s32.totalorder %s57, %s59
    %p63 = scmp.eq.s32.totalorder %s9, 0
    %p64 = por %p62, %p63
    %p65 = scmp.ne.s32.totalorder %s57, %s59
    %p66 = scmp.eq.s32.totalorder %s14, 1
    %p67 = por %p65, %p66
    %p68 = scmp.ne.s32.totalorder %s59, %s60
    %p69 = scmp.eq.s32.totalorder %s14, 0
    %p70 = por %p68, %p69
    %p71 = scmp.ne.s32.totalorder %s59, %s60
    %p72 = scmp.eq.s32.totalorder %s15, 1
    %p73 = por %p71, %p72
    %p75 = scmp.ne.s32.totalorder %s60, %s74
    %p76 = scmp.eq.s32.totalorder %s15, 0
    %p77 = por %p75, %p76
    %s79 = sadd.s32 %s78, 1
    %p82 = scmp.eq.s32.totalorder %s9, 1
    %p83 = scmp.ne.s32.totalorder %s78, %s80
    %p84 = scmp.eq.s32.totalorder %s9, 0
    %p85 = por %p83, %p84
    %p86 = scmp.ne.s32.totalorder %s78, %s80
    %p87 = scmp.eq.s32.totalorder %s14, 1
    %p88 = por %p86, %p87
    %p89 = scmp.ne.s32.totalorder %s80, %s81
    %p90 = scmp.eq.s32.totalorder %s14, 0
    %p91 = por %p89, %p90
    %p92 = scmp.ne.s32.totalorder %s80, %s81
    %p93 = scmp.eq.s32.totalorder %s15, 1
    %p94 = por %p92, %p93
    %p96 = scmp.ne.s32.totalorder %s81, %s95
    %p97 = scmp.eq.s32.totalorder %s15, 0
    %p98 = por %p96, %p97
    %s99 = ssub.s32 %s16, %s28
    %s100 = ssub.s32 %s17, %s24
    %s101 = sor.u32 %s99, %s100
    %p102 = scmp.eq.s32.totalorder %s101, 0
    %s104 = sadd.s32 %s103, 1
    %s105 = scalar_select %p102, %s103, %s104
    %p108 = pneg %p102
    %p109 = scmp.eq.s32.totalorder %s9, 1
    %p110 = por %p108, %p109
    %p111 = scmp.ne.s32.totalorder %s103, %s106
    %p112 = scmp.eq.s32.totalorder %s9, 0
    %p113 = por %p111, %p112
    %p114 = scmp.ne.s32.totalorder %s103, %s106
    %p115 = scmp.eq.s32.totalorder %s14, 1
    %p116 = por %p114, %p115
    %p117 = scmp.ne.s32.totalorder %s106, %s107
    %p118 = scmp.eq.s32.totalorder %s14, 0
    %p119 = por %p117, %p118
    %p120 = scmp.ne.s32.totalorder %s106, %s107
    %p121 = scmp.eq.s32.totalorder %s15, 1
    %p122 = por %p120, %p121
    %p124 = scmp.ne.s32.totalorder %s107, %s123
    %p125 = scmp.eq.s32.totalorder %s15, 0
    %p126 = por %p124, %p125
    %p127 = scmp.le.s32.totalorder 1, %s9
    %p128 = scmp.lt.s32.totalorder %s9, 3
    %p129 = pnand %p127, %p128
    %p130 = pneg %p129
    // Predicated region
    $region9: #{angular_conv_pallas.1} parent=5 // pred_check
      _
    $region10: #{angular_conv_pallas.1} parent=5 // pred_check_branch
      %132 = sbr.rel (%p129) target = $region12
    $region11: #{angular_conv_pallas.1} parent=5 // pred_region
      %s133 = ssub.s32 %s9, 1
      // Predicated region
      $region13: #{angular_conv_pallas.1} parent=11 // pred_check
        %p134 = pneg %p70
      $region14: #{angular_conv_pallas.1} parent=11 // pred_check_branch
        %136 = sbr.rel (%p134) target = $region16
      $region15: #{angular_conv_pallas.1} parent=11 // pred_region
        _
      $region16: #{angular_conv_pallas.1} parent=11 // pred_fallthru
        _
      // Predicated region
      $region17: #{angular_conv_pallas.1} parent=11 // pred_check
        %p137 = pneg %p91
      $region18: #{angular_conv_pallas.1} parent=11 // pred_check_branch
        %139 = sbr.rel (%p137) target = $region20
      $region19: #{angular_conv_pallas.1} parent=11 // pred_region
        _
      $region20: #{angular_conv_pallas.1} parent=11 // pred_fallthru
        _
    $region12: #{angular_conv_pallas.1} parent=5 // pred_fallthru
      _
    %p140 = scmp.lt.s32.totalorder %s9, 2
    // Predicated region
    $region21: #{angular_conv_pallas.1} parent=5 // pred_check
      %p141 = pneg %p140
    $region22: #{angular_conv_pallas.1} parent=5 // pred_check_branch
      %143 = sbr.rel (%p141) target = $region24
    $region23: #{angular_conv_pallas.1} parent=5 // pred_region
      // Predicated region
      $region25: #{angular_conv_pallas.1} parent=23 // pred_check
        %p144 = pneg %p43
      $region26: #{angular_conv_pallas.1} parent=23 // pred_check_branch
        %146 = sbr.rel (%p144) target = $region28
      $region27: #{angular_conv_pallas.1} parent=23 // pred_region
        %s147 = smul.u32 2, %s17
        %p148 = scmp.lt.s32.totalorder %s16, 1
        %s149 = scalar_select %p148, %s16, 1
        %p150 = scmp.lt.s32.totalorder %s147, 1
        %s151 = scalar_select %p150, %s147, 1
        %s152 = smul.addr %s149, 4
        %s153 = sadd.s32 %s151, %s152
        %s154 = smul.addr %s153, 8
        %s155 = scalar_lea.vmem %s0, %s154
        %s156 = smul.u32 2, %s17
      $region28: #{angular_conv_pallas.1} parent=23 // pred_fallthru
        _
    $region24: #{angular_conv_pallas.1} parent=5 // pred_fallthru
      _
    %p157 = scmp.le.s32.totalorder 1, %s9
    %p158 = scmp.lt.s32.totalorder %s9, 3
    %p159 = pnand %p157, %p158
    %p160 = pneg %p159
    // Predicated region
    $region29: #{angular_conv_pallas.1} parent=5 // pred_check
      _
    $region30: #{angular_conv_pallas.1} parent=5 // pred_check_branch
      %162 = sbr.rel (%p159) target = $region32
    $region31: #{angular_conv_pallas.1} parent=5 // pred_region
      %s163 = ssub.s32 %s9, 1
      %s164 = smul.u32 2, %s19
      %p165 = scmp.lt.s32.totalorder %s18, 1
      %s166 = scalar_select %p165, %s18, 1
      %p167 = scmp.lt.s32.totalorder %s164, 1
      %s168 = scalar_select %p167, %s164, 1
      %s169 = smul.addr %s166, 4
      %s170 = sadd.s32 %s168, %s169
      %s171 = smul.addr %s170, 8
      %s172 = scalar_lea.vmem %s0, %s171
      %p173 = pneg %p49
      %p174 = pneg %p46
      %p175 = pneg %p70
      %p176 = pneg %p67
      %p177 = pneg %p91
      %p178 = pneg %p88
      %p179 = pneg %p119
      %p180 = pneg %p116
      %s181 = smul.u32 2, %s19
      %p182 = scmp.lt.s32.totalorder %s18, 1
      %s183 = scalar_select %p182, %s18, 1
      %p184 = scmp.lt.s32.totalorder %s181, 1
      %s185 = scalar_select %p184, %s181, 1
      %s186 = smul.addr %s183, 16
      %s187 = sadd.s32 %s185, %s186
      %s188 = smul.addr %s187, 8
      %s189 = scalar_lea.vmem %s3, %s188
      %s190 = smul.u32 2, %s19
      %p191 = scmp.lt.s32.totalorder %s18, 1
      %s192 = scalar_select %p191, %s18, 1
      %p193 = scmp.lt.s32.totalorder %s190, 1
      %s194 = scalar_select %p193, %s190, 1
      %s195 = smul.addr %s192, 4
      %s196 = sadd.s32 %s194, %s195
      %s197 = smul.addr %s196, 8
      %s198 = scalar_lea.vmem %s0, %s197
      %s199 = smul.u32 2, %s19
      %s200 = smul.u32 2, %s19
      %p201 = scmp.lt.s32.totalorder %s18, 1
      %s202 = scalar_select %p201, %s18, 1
      %p203 = scmp.lt.s32.totalorder %s200, 1
      %s204 = scalar_select %p203, %s200, 1
      %s205 = smul.addr %s202, 16
      %s206 = sadd.s32 %s204, %s205
      %s207 = smul.addr %s206, 8
      %s208 = scalar_lea.vmem %s3, %s207
      %s209 = smul.u32 2, %s19
      %v211 = vld [vmem:[%s198] sm:$0xff]
      %v212 = vld [vmem:[%s198 + $0x8] sm:$0xff]
      %v213 = vld [vmem:[%s198 + $0x10] sm:$0xff]
      %v214 = vld [vmem:[%s198 + $0x18] sm:$0xff]
      %v215 = vpack.c.bf16 %v213, %v211
      %v216 = vpack.c.bf16 %v214, %v212
      %v217 = vld [vmem:[%s1] sm:$0xf]
      %v218 = vld [vmem:[%s1 + $0x4] sm:$0xf]
      %v221 = vunpack.c.l.b16 %v217
      %v222 = vunpack.c.l.b16 %v218
      %v223 = vpack.c.b16 %v222, %v221
      %vm224 = vcmask 130048
      %v226 = vsel %vm224, %v223, 0
      %228 = vmatpush.bf16.msra.mxu0 0
      %229 = vmatpush.bf16.msra.mxu0 0
      %230 = vmatpush.bf16.msra.mxu0 0
      %231 = vmatpush.bf16.msra.mxu0 0
      %232 = vmatpush.bf16.msra.mxu0 0
      %233 = vmatpush.bf16.msra.mxu0 0
      %234 = vmatpush.bf16.msra.mxu0 0
      %235 = vmatpush.bf16.msra.mxu0 %v215
      %236 = vmatmul.bf16.gmra.mxu0 %v226
      %v237 = vpop.f32.mrf.mxu0
      %v238 = vadd.f32 0.0, %v237
      %v239 = vpop.f32.mrf.mxu0
      %v240 = vadd.f32 0.0, %v239
      %241 = vdwg.mxu0
      %242 = vmatpush.bf16.msra.mxu0 0
      %243 = vmatpush.bf16.msra.mxu0 0
      %244 = vmatpush.bf16.msra.mxu0 0
      %245 = vmatpush.bf16.msra.mxu0 0
      %246 = vmatpush.bf16.msra.mxu0 0
      %247 = vmatpush.bf16.msra.mxu0 0
      %248 = vmatpush.bf16.msra.mxu0 0
      %249 = vmatpush.bf16.msra.mxu0 %v216
      %250 = vmatmul.bf16.gmra.mxu0 %v226
      %v251 = vpop.f32.mrf.mxu0
      %v252 = vadd.f32 0.0, %v251
      %v253 = vpop.f32.mrf.mxu0
      %v254 = vadd.f32 0.0, %v253
      %255 = vdwg.mxu0
      %vm256 = vcmp.ge.f32.partialorder %v238, 0.0
      %vm257 = vcmp.ge.f32.partialorder %v252, 0.0
      %vm258 = vcmp.ge.f32.partialorder %v240, 0.0
      %vm259 = vcmp.ge.f32.partialorder %v254, 0.0
      %v260 = vmul.f32 %v238, 0.2
      %v261 = vmul.f32 %v252, 0.2
      %v262 = vmul.f32 %v240, 0.2
      %v263 = vmul.f32 %v254, 0.2
      %v264 = vsel %vm256, %v238, %v260
      %v265 = vsel %vm257, %v252, %v261
      %v266 = vsel %vm258, %v240, %v262
      %v267 = vsel %vm259, %v254, %v263
      %v268 = vld [vmem:[%s2] sm:$0xf]
      %v269 = vld [vmem:[%s2 + $0x4] sm:$0xf]
      %v270 = vld [vmem:[%s2 + $0x8] sm:$0xf]
      %v271 = vld [vmem:[%s2 + $0xc] sm:$0xf]
      %v272 = vld [vmem:[%s2 + $0x10] sm:$0xf]
      %v273 = vld [vmem:[%s2 + $0x14] sm:$0xf]
      %v274 = vld [vmem:[%s2 + $0x18] sm:$0xf]
      %v275 = vld [vmem:[%s2 + $0x1c] sm:$0xf]
      %v276 = vpack.c.bf16 %v266, %v264
      %v277 = vpack.c.bf16 %v267, %v265
      %v286 = vunpack.c.l.b16 %v268
      %v287 = vunpack.c.l.b16 %v269
      %v288 = vunpack.c.l.b16 %v270
      %v289 = vunpack.c.l.b16 %v271
      %v290 = vunpack.c.l.b16 %v272
      %v291 = vunpack.c.l.b16 %v273
      %v292 = vunpack.c.l.b16 %v274
      %v293 = vunpack.c.l.b16 %v275
      %v294 = vpack.c.b16 %v287, %v286
      %v295 = vpack.c.b16 %v289, %v288
      %v296 = vpack.c.b16 %v291, %v290
      %v297 = vpack.c.b16 %v293, %v292
      %v299 = vsel %vm224, %v294, 0
      %v302 = vsel %vm224, %v295, 0
      %v305 = vsel %vm224, %v296, 0
      %v308 = vsel %vm224, %v297, 0
      %310 = vmatpush.bf16.msra.mxu0 0
      %311 = vmatpush.bf16.msra.mxu0 0
      %312 = vmatpush.bf16.msra.mxu0 0
      %313 = vmatpush.bf16.msra.mxu0 0
      %314 = vmatpush.bf16.msra.mxu0 0
      %315 = vmatpush.bf16.msra.mxu0 0
      %316 = vmatpush.bf16.msra.mxu0 0
      %317 = vmatpush.bf16.msra.mxu0 %v276
      %318 = vmatmul.bf16.gmra.mxu0 %v299
      %v319 = vpop.f32.mrf.mxu0
      %v320 = vadd.f32 0.0, %v319
      %v321 = vpop.f32.mrf.mxu0
      %v322 = vadd.f32 0.0, %v321
      %323 = vmatmul.bf16.gmra.mxu0 %v302
      %v324 = vpop.f32.mrf.mxu0
      %v325 = vadd.f32 0.0, %v324
      %v326 = vpop.f32.mrf.mxu0
      %v327 = vadd.f32 0.0, %v326
      %328 = vmatmul.bf16.gmra.mxu0 %v305
      %v329 = vpop.f32.mrf.mxu0
      %v330 = vadd.f32 0.0, %v329
      %v331 = vpop.f32.mrf.mxu0
      %v332 = vadd.f32 0.0, %v331
      %333 = vmatmul.bf16.gmra.mxu0 %v308
      %v334 = vpop.f32.mrf.mxu0
      %v335 = vadd.f32 0.0, %v334
      %v336 = vpop.f32.mrf.mxu0
      %v337 = vadd.f32 0.0, %v336
      %338 = vdwg.mxu0
      %339 = vmatpush.bf16.msra.mxu0 0
      %340 = vmatpush.bf16.msra.mxu0 0
      %341 = vmatpush.bf16.msra.mxu0 0
      %342 = vmatpush.bf16.msra.mxu0 0
      %343 = vmatpush.bf16.msra.mxu0 0
      %344 = vmatpush.bf16.msra.mxu0 0
      %345 = vmatpush.bf16.msra.mxu0 0
      %346 = vmatpush.bf16.msra.mxu0 %v277
      %347 = vmatmul.bf16.gmra.mxu0 %v299
      %v348 = vpop.f32.mrf.mxu0
      %v349 = vadd.f32 0.0, %v348
      %v350 = vpop.f32.mrf.mxu0
      %v351 = vadd.f32 0.0, %v350
      %352 = vmatmul.bf16.gmra.mxu0 %v302
      %v353 = vpop.f32.mrf.mxu0
      %v354 = vadd.f32 0.0, %v353
      %v355 = vpop.f32.mrf.mxu0
      %v356 = vadd.f32 0.0, %v355
      %357 = vmatmul.bf16.gmra.mxu0 %v305
      %v358 = vpop.f32.mrf.mxu0
      %v359 = vadd.f32 0.0, %v358
      %v360 = vpop.f32.mrf.mxu0
      %v361 = vadd.f32 0.0, %v360
      %362 = vmatmul.bf16.gmra.mxu0 %v308
      %v363 = vpop.f32.mrf.mxu0
      %v364 = vadd.f32 0.0, %v363
      %v365 = vpop.f32.mrf.mxu0
      %v366 = vadd.f32 0.0, %v365
      %367 = vdwg.mxu0
      %vm368 = vcmp.ge.f32.partialorder %v320, 0.0
      %vm369 = vcmp.ge.f32.partialorder %v349, 0.0
      %vm370 = vcmp.ge.f32.partialorder %v322, 0.0
      %vm371 = vcmp.ge.f32.partialorder %v351, 0.0
      %vm372 = vcmp.ge.f32.partialorder %v325, 0.0
      %vm373 = vcmp.ge.f32.partialorder %v354, 0.0
      %vm374 = vcmp.ge.f32.partialorder %v327, 0.0
      %vm375 = vcmp.ge.f32.partialorder %v356, 0.0
      %vm376 = vcmp.ge.f32.partialorder %v330, 0.0
      %vm377 = vcmp.ge.f32.partialorder %v359, 0.0
      %vm378 = vcmp.ge.f32.partialorder %v332, 0.0
      %vm379 = vcmp.ge.f32.partialorder %v361, 0.0
      %vm380 = vcmp.ge.f32.partialorder %v335, 0.0
      %vm381 = vcmp.ge.f32.partialorder %v364, 0.0
      %vm382 = vcmp.ge.f32.partialorder %v337, 0.0
      %vm383 = vcmp.ge.f32.partialorder %v366, 0.0
      %v384 = vmul.f32 %v320, 0.2
      %v385 = vmul.f32 %v349, 0.2
      %v386 = vmul.f32 %v322, 0.2
      %v387 = vmul.f32 %v351, 0.2
      %v388 = vmul.f32 %v325, 0.2
      %v389 = vmul.f32 %v354, 0.2
      %v390 = vmul.f32 %v327, 0.2
      %v391 = vmul.f32 %v356, 0.2
      %v392 = vmul.f32 %v330, 0.2
      %v393 = vmul.f32 %v359, 0.2
      %v394 = vmul.f32 %v332, 0.2
      %v395 = vmul.f32 %v361, 0.2
      %v396 = vmul.f32 %v335, 0.2
      %v397 = vmul.f32 %v364, 0.2
      %v398 = vmul.f32 %v337, 0.2
      %v399 = vmul.f32 %v366, 0.2
      %v400 = vsel %vm368, %v320, %v384
      %v401 = vsel %vm369, %v349, %v385
      %v402 = vsel %vm370, %v322, %v386
      %v403 = vsel %vm371, %v351, %v387
      %v404 = vsel %vm372, %v325, %v388
      %v405 = vsel %vm373, %v354, %v389
      %v406 = vsel %vm374, %v327, %v390
      %v407 = vsel %vm375, %v356, %v391
      %v408 = vsel %vm376, %v330, %v392
      %v409 = vsel %vm377, %v359, %v393
      %v410 = vsel %vm378, %v332, %v394
      %v411 = vsel %vm379, %v361, %v395
      %v412 = vsel %vm380, %v335, %v396
      %v413 = vsel %vm381, %v364, %v397
      %v414 = vsel %vm382, %v337, %v398
      %v415 = vsel %vm383, %v366, %v399
      %416 = vst [vmem:[%s208] sm:$0xff] %v400
      %417 = vst [vmem:[%s208 + $0x8] sm:$0xff] %v401
      %418 = vst [vmem:[%s208 + $0x10] sm:$0xff] %v402
      %419 = vst [vmem:[%s208 + $0x18] sm:$0xff] %v403
      %420 = vst [vmem:[%s208 + $0x20] sm:$0xff] %v404
      %421 = vst [vmem:[%s208 + $0x28] sm:$0xff] %v405
      %422 = vst [vmem:[%s208 + $0x30] sm:$0xff] %v406
      %423 = vst [vmem:[%s208 + $0x38] sm:$0xff] %v407
      %424 = vst [vmem:[%s208 + $0x40] sm:$0xff] %v408
      %425 = vst [vmem:[%s208 + $0x48] sm:$0xff] %v409
      %426 = vst [vmem:[%s208 + $0x50] sm:$0xff] %v410
      %427 = vst [vmem:[%s208 + $0x58] sm:$0xff] %v411
      %428 = vst [vmem:[%s208 + $0x60] sm:$0xff] %v412
      %429 = vst [vmem:[%s208 + $0x68] sm:$0xff] %v413
      %430 = vst [vmem:[%s208 + $0x70] sm:$0xff] %v414
      %431 = vst [vmem:[%s208 + $0x78] sm:$0xff] %v415
      %s432 = smul.u32 2, %s19
      %p433 = scmp.lt.s32.totalorder %s18, 1
      %s434 = scalar_select %p433, %s18, 1
      %p435 = scmp.lt.s32.totalorder %s432, 1
      %s436 = scalar_select %p435, %s432, 1
      %s437 = smul.addr %s434, 16
      %s438 = sadd.s32 %s436, %s437
      %s439 = smul.addr %s438, 8
      %s440 = scalar_lea.vmem %s3, %s439
      // Predicated region
      $region33: #{angular_conv_pallas.1} parent=31 // pred_check
        %p441 = pneg %p116
      $region34: #{angular_conv_pallas.1} parent=31 // pred_check_branch
        %443 = sbr.rel (%p441) target = $region36
      $region35: #{angular_conv_pallas.1} parent=31 // pred_region
        %s444 = smul.u32 2, %s19
      $region36: #{angular_conv_pallas.1} parent=31 // pred_fallthru
        _
    $region32: #{angular_conv_pallas.1} parent=5 // pred_fallthru
      _
    %p445 = scmp.le.s32.totalorder 2, %s9
    // Predicated region
    $region37: #{angular_conv_pallas.1} parent=5 // pred_check
      %p446 = pneg %p445
    $region38: #{angular_conv_pallas.1} parent=5 // pred_check_branch
      %448 = sbr.rel (%p446) target = $region40
    $region39: #{angular_conv_pallas.1} parent=5 // pred_region
      %s449 = ssub.s32 %s9, 2
      // Predicated region
      $region41: #{angular_conv_pallas.1} parent=39 // pred_check
        %p450 = pneg %p122
      $region42: #{angular_conv_pallas.1} parent=39 // pred_check_branch
        %452 = sbr.rel (%p450) target = $region44
      $region43: #{angular_conv_pallas.1} parent=39 // pred_region
        %s453 = smul.u32 2, %s21
        %p454 = scmp.lt.s32.totalorder %s20, 1
        %s455 = scalar_select %p454, %s20, 1
        %p456 = scmp.lt.s32.totalorder %s453, 1
        %s457 = scalar_select %p456, %s453, 1
        %s458 = smul.addr %s455, 16
        %s459 = sadd.s32 %s457, %s458
        %s460 = smul.addr %s459, 8
        %s461 = scalar_lea.vmem %s3, %s460
      $region44: #{angular_conv_pallas.1} parent=39 // pred_fallthru
        _
    $region40: #{angular_conv_pallas.1} parent=5 // pred_fallthru
      _
  $region6: #{angular_conv_pallas.1} parent=0 // loop_footer
    %s13 = sadd.s32 1, %s9
  $region7: #{angular_conv_pallas.1} parent=0 // loop_footer_branch
    %8 = sbr.rel target = $region3
  $region8: #{angular_conv_pallas.1} parent=0 // loop_exit
    _

</llo_original>
